<compile_context>
chip_gen: v7x
topology: tpu7x:2x2x1
jax: 0.10.0
libtpu: 0.0.40
codegen_flags: <defaults>
</compile_context>

<pallas_src>
import functools

import jax
import jax.numpy as jnp
from jax.experimental import pallas as pl
from jax.experimental.pallas import tpu as pltpu

NEG_SLOPE = 0.2  # LeakyReLU alpha


def _round_up(x, m):
    return ((x + m - 1) // m) * m


# ---------------------------------------------------------------------------
# Kernel A: fused projection   proj = feats @ [W_cat | Wres_cat | A_l | A_r]
# bf16 operands, f32 accumulation.  Din is kept whole (tile K for huge Din).
# ---------------------------------------------------------------------------
def _proj_kernel(x_ref, w_ref, o_ref):
    o_ref[...] = jnp.dot(x_ref[...], w_ref[...],
                         preferred_element_type=jnp.float32)


# ---------------------------------------------------------------------------
# Kernel B: masked edge softmax + neighbor aggregation (flash-style online
# softmax over source tiles).  grid = (dst_tiles, src_tiles).
# ---------------------------------------------------------------------------
def _gat_attn_kernel(er_ref, el_ref, adj_ref, wh_ref, resb_ref, out_ref,
                     m_scr, l_scr, acc_scr, *, num_heads):
    j = pl.program_id(1)
    nj = pl.num_programs(1)

    @pl.when(j == 0)
    def _():
        m_scr[...] = jnp.full_like(m_scr, -1e30)
        l_scr[...] = jnp.zeros_like(l_scr)
        acc_scr[...] = jnp.zeros_like(acc_scr)

    # Additive mask, built once per adjacency tile and shared by all heads.
    neg = jnp.where(adj_ref[...] > 0, jnp.float32(0.0), jnp.float32(-1e30))

    er = er_ref[...]          # (TD, H)  destination attention terms
    el = el_ref[...]          # (H, TS)  source attention terms

    for h in range(num_heads):                       # H is small & static
        # e[v, u] = LeakyReLU(er[v] + el[u]) + mask[v, u]
        e = er[:, h:h + 1] + el[h:h + 1, :]          # (TD, TS)
        e = jnp.maximum(e, NEG_SLOPE * e)            # LeakyReLU (0 < slope < 1)
        e = e + neg

        m_prev = m_scr[h]                            # (TD, 1)
        m_new = jnp.maximum(m_prev, jnp.max(e, axis=1, keepdims=True))
        alpha = jnp.exp(m_prev - m_new)
        p = jnp.exp(e - m_new)                       # masked entries -> 0.0

        l_scr[h] = alpha * l_scr[h] + jnp.sum(p, axis=1, keepdims=True)
        acc_scr[h] = alpha * acc_scr[h] + jnp.dot(
            p.astype(jnp.bfloat16), wh_ref[h],
            preferred_element_type=jnp.float32)
        m_scr[h] = m_new

    @pl.when(j == nj - 1)
    def _():
        cols = []
        for h in range(num_heads):
            # With the additive mask, l > 0 even for all-masked rows, but clamp
            # anyway (isolated / padded dst rows never produce inf/NaN).
            inv = pl.reciprocal(jnp.maximum(l_scr[h], 1e-20), approx=True)
            cols.append(acc_scr[h] * inv)
        rst = jnp.concatenate(cols, axis=1)          # (TD, H*F), lane-dense
        out_ref[...] = (rst + resb_ref[...]).astype(out_ref.dtype)


# ---------------------------------------------------------------------------
# Wrapper
# ---------------------------------------------------------------------------
def gat_layer_flatten(feats, adj, W, attn_l, attn_r, Wres, bias):
    """GATLayer forward (agg_mode='flatten', activation=None, eval mode).

    feats : (N, Din) f32     adj : (N, N),  adj[v, u] != 0 iff edge u -> v
    W, Wres : (H, Din, F)    attn_l, attn_r, bias : (H, 1, F)
    returns (N, H*F) f32
    """
    N, Din = feats.shape
    H, _, F = W.shape
    HF = H * F

    # ---- fold parameters (tiny, done once) -------------------------------
    w_cat = jnp.transpose(W, (1, 0, 2)).reshape(Din, HF)        # head-major cols
    wres_cat = jnp.transpose(Wres, (1, 0, 2)).reshape(Din, HF)
    a_l = jnp.einsum('hdf,hf->dh', W, attn_l[:, 0, :])          # (Din, H)
    a_r = jnp.einsum('hdf,hf->dh', W, attn_r[:, 0, :])          # (Din, H)
    big_w = jnp.concatenate([w_cat, wres_cat, a_l, a_r],
                            axis=1).astype(jnp.bfloat16)        # (Din, 2HF+2H)
    wtot = 2 * HF + 2 * H
    bias_flat = bias[:, 0, :].reshape(1, HF).astype(jnp.float32)

    # ---- tiling / zero padding -------------------------------------------
    # Single full-extent tile for small graphs; 128-node tiles otherwise
    # (bump toward 256/512 for large graphs while staying in the VMEM budget).
    tile = _round_up(N, 32) if N <= 128 else 128
    n_pad = _round_up(N, tile)
    n_tiles = n_pad // tile

    feats_p = jnp.pad(feats, ((0, n_pad - N), (0, 0))).astype(jnp.bfloat16)
    adj_p = jnp.pad((adj != 0).astype(jnp.int8),
                    ((0, n_pad - N), (0, n_pad - N)))            # int8 mask

    # ---- kernel A: fused projection ---------------------------------------
    proj = pl.pallas_call(
        _proj_kernel,
        out_shape=jax.ShapeDtypeStruct((n_pad, wtot), jnp.float32),
        grid=(n_tiles,),
        in_specs=[pl.BlockSpec((tile, Din), lambda i: (i, 0)),
                  pl.BlockSpec((Din, wtot), lambda i: (0, 0))],
        out_specs=pl.BlockSpec((tile, wtot), lambda i: (i, 0)),
        compiler_params=pltpu.CompilerParams(
            dimension_semantics=("parallel",)),
    )(feats_p, big_w)

    wh = proj[:, :HF]                              # projected features
    res = proj[:, HF:2 * HF]                       # residual projection
    el = proj[:, 2 * HF:2 * HF + H]                # source attention term
    er = proj[:, 2 * HF + H:2 * HF + 2 * H]        # destination attention term

    # Layout plumbing (O(N*H*F), negligible vs the O(N^2) attention): present
    # wh head-major and el row-major so kernel B needs no in-kernel transposes.
    wh_hsf = jnp.transpose(wh.reshape(n_pad, H, F),
                           (1, 0, 2)).astype(jnp.bfloat16)       # (H, n_pad, F)
    el_hn = jnp.transpose(el)                                    # (H, n_pad)
    resb = res + bias_flat                                       # (n_pad, H*F)

    # ---- kernel B: attention + aggregation ---------------------------------
    out_p = pl.pallas_call(
        functools.partial(_gat_attn_kernel, num_heads=H),
        out_shape=jax.ShapeDtypeStruct((n_pad, HF), jnp.float32),
        grid=(n_tiles, n_tiles),
        in_specs=[
            pl.BlockSpec((tile, H), lambda i, j: (i, 0)),         # er
            pl.BlockSpec((H, tile), lambda i, j: (0, j)),         # el
            pl.BlockSpec((tile, tile), lambda i, j: (i, j)),      # adj (int8)
            pl.BlockSpec((H, tile, F), lambda i, j: (0, j, 0)),   # wh (bf16)
            pl.BlockSpec((tile, HF), lambda i, j: (i, 0)),        # residual+bias
        ],
        out_specs=pl.BlockSpec((tile, HF), lambda i, j: (i, 0)),
        scratch_shapes=[pltpu.VMEM((H, tile, 1), jnp.float32),    # running max
                        pltpu.VMEM((H, tile, 1), jnp.float32),    # running denom
                        pltpu.VMEM((H, tile, F), jnp.float32)],   # accumulator
        compiler_params=pltpu.CompilerParams(
            dimension_semantics=("parallel", "arbitrary")),
    )(er, el_hn, adj_p, wh_hsf, resb)

    return out_p[:N]


def gat_layer_reference(feats, adj, W, attn_l, attn_r, Wres, bias):
    """Pure-JAX f32 reference implementing the same DGL GATConv math."""
    N = feats.shape[0]
    H, _, F = W.shape
    wh = jnp.einsum('nd,hdf->nhf', feats, W)                       # (N, H, F)
    el = jnp.sum(wh * attn_l[:, 0, :], axis=-1)                    # (N, H)
    er = jnp.sum(wh * attn_r[:, 0, :], axis=-1)                    # (N, H)
    e = er[:, None, :] + el[None, :, :]                            # (Nd, Ns, H)
    e = jnp.where(e > 0, e, NEG_SLOPE * e)
    mask = (adj > 0)[:, :, None]
    e_m = jnp.where(mask, e, -1e30)
    p = jnp.where(mask, jnp.exp(e_m - jnp.max(e_m, axis=1, keepdims=True)), 0.0)
    a = p / jnp.sum(p, axis=1, keepdims=True)                      # (Nd, Ns, H)
    rst = jnp.einsum('vuh,uhf->vhf', a, wh)                        # (N, H, F)
    res = jnp.einsum('nd,hdf->nhf', feats, Wres)
    out = rst + res + bias[:, 0, :][None]
    return out.reshape(N, H * F)


if __name__ == "__main__":
    # Small, GAT-consistent shapes: N atoms, in_feats, out_feats/head, heads.
    N, IN_FEATS, OUT_FEATS, NUM_HEADS = 16, 32, 16, 4

    key = jax.random.PRNGKey(0)
    k_feat, k_adj, k_w, k_al, k_ar, k_res = jax.random.split(key, 6)

    feats = jax.random.normal(k_feat, (N, IN_FEATS), dtype=jnp.float32)

    # Random sparse directed graph + self loops (in-degree >= 1, matching the
    # DGL edge_softmax requirement).
    adj = (jax.random.uniform(k_adj, (N, N)) < 0.3).astype(jnp.float32)
    adj = jnp.maximum(adj, jnp.eye(N, dtype=jnp.float32))

    # Xavier-normal-like init (gain sqrt(2)), GATConv parameter shapes.
    gain = jnp.sqrt(2.0)
    w_std = gain * jnp.sqrt(2.0 / (IN_FEATS + OUT_FEATS * NUM_HEADS))
    a_std = gain * jnp.sqrt(2.0 / (1 + OUT_FEATS))
    W = w_std * jax.random.normal(
        k_w, (NUM_HEADS, IN_FEATS, OUT_FEATS), dtype=jnp.float32)
    Wres = w_std * jax.random.normal(
        k_res, (NUM_HEADS, IN_FEATS, OUT_FEATS), dtype=jnp.float32)
    attn_l = a_std * jax.random.normal(
        k_al, (NUM_HEADS, 1, OUT_FEATS), dtype=jnp.float32)
    attn_r = a_std * jax.random.normal(
        k_ar, (NUM_HEADS, 1, OUT_FEATS), dtype=jnp.float32)
    bias = jnp.zeros((NUM_HEADS, 1, OUT_FEATS), dtype=jnp.float32)

    out = gat_layer_flatten(feats, adj, W, attn_l, attn_r, Wres, bias)
    out = jax.block_until_ready(out)

    ref = gat_layer_reference(feats, adj, W, attn_l, attn_r, Wres, bias)
    assert out.shape == (N, NUM_HEADS * OUT_FEATS)

    # Kernel uses bf16 MXU operands (f32 accumulation) + approx reciprocal,
    # so compare against the f32 reference with a bf16-level tolerance.
    err = float(jnp.max(jnp.abs(out - ref)))
    scale = float(jnp.max(jnp.abs(ref)))
    assert err <= 1e-1 + 2e-2 * scale, \
        f"mismatch vs reference: max_err={err}, ref_scale={scale}"

    print("KERNEL_OK")
</pallas_src>

<mosaic_0001>
module attributes {stable_mosaic.version = 11 : i64} {
  func.func @_proj_kernel(%arg0: i32, %arg1: memref<32x32xbf16, #tpu.memory_space<vmem>>, %arg2: memref<32x136xbf16, #tpu.memory_space<vmem>>, %arg3: memref<32x136xf32, #tpu.memory_space<vmem>>) attributes {dimension_semantics = [#tpu.dimension_semantics<parallel>], iteration_bounds = array<i64: 1>, scalar_prefetch = 0 : i64, scratch_operands = 0 : i64, tpu.core_type = #tpu.core_type<tc>, window_params = [{transform_indices = @transform_0, window_bounds = array<i64: 32, 32>}, {pipeline_mode = #tpu.pipeline_mode<synchronous>, transform_indices = @transform_1, window_bounds = array<i64: 32, 136>}, {transform_indices = @transform_2, window_bounds = array<i64: 32, 136>}]} {
    %c0 = arith.constant 0 : index
    %c0_0 = arith.constant 0 : index
    %0 = vector.load %arg1[%c0, %c0_0] : memref<32x32xbf16, #tpu.memory_space<vmem>>, vector<32x32xbf16>
    %c0_1 = arith.constant 0 : index
    %c0_2 = arith.constant 0 : index
    %1 = vector.load %arg2[%c0_1, %c0_2] : memref<32x136xbf16, #tpu.memory_space<vmem>>, vector<32x136xbf16>
    %cst = arith.constant dense<0.000000e+00> : vector<32x136xf32>
    %2 = tpu.matmul %0, %1, %cst {dimension_numbers = #tpu.dot_dimension_numbers<[1], [0], [0], [1], [0, 0, 1, 1], [], []>} : vector<32x32xbf16>, vector<32x136xbf16>, vector<32x136xf32> -> vector<32x136xf32>
    %c0_3 = arith.constant 0 : index
    %c0_4 = arith.constant 0 : index
    %3 = vector.load %arg3[%c0_3, %c0_4] : memref<32x136xf32, #tpu.memory_space<vmem>>, vector<32x136xf32>
    tpu.vector_store %arg3[%c0_3, %c0_4], %2 {strides = array<i32>} : memref<32x136xf32, #tpu.memory_space<vmem>>, vector<32x136xf32>,
    return
  }
  func.func @transform_0(%arg0: i32) -> (i32, i32) {
    %c0_i32 = arith.constant 0 : i32
    %c0_i32_0 = arith.constant 0 : i32
    return %arg0, %c0_i32 : i32, i32
  }
  func.func @transform_1(%arg0: i32) -> (i32, i32) {
    %c0_i32 = arith.constant 0 : i32
    %c0_i32_0 = arith.constant 0 : i32
    %c0_i32_1 = arith.constant 0 : i32
    return %c0_i32, %c0_i32_0 : i32, i32
  }
  func.func @transform_2(%arg0: i32) -> (i32, i32) {
    %c0_i32 = arith.constant 0 : i32
    %c0_i32_0 = arith.constant 0 : i32
    return %arg0, %c0_i32 : i32, i32
  }
}

</mosaic_0001>

<llo_original>
// kernel: tpu_custom_call.1
$region0: #{tpu_custom_call.1}
  #allocation0 [shape = 'u32[]', space=smem, size = 0x4, offset = 0x4, fixed_abs, tag = 'smem constant byte address 0x4 - core index']
  #allocation1 [shape = 'u32[144,128]{1,0:T(1,128)}', space=vmem, size = 0x12000, scoped, tag = 'internal scratch']
  %s0 = inlined_call_operand.hbm [shape: bf16[32,32], index: 0, kind: input, shape index: {}]
  %s1 = inlined_call_operand.hbm [shape: bf16[32,136], index: 1, kind: input, shape index: {}]
  %s2 = inlined_call_operand.hbm [shape: f32[32,136], index: 2, kind: output, shape index: {}]
  %s3 = sld [smem:[#allocation0]]
  $region26: #{tpu_custom_call.1} parent=0
    _
  %s5 = ssub.s32 1, %s3
  %s6 = scalar_select 0, %s5, %s3
  $region1: #{tpu_custom_call.1} parent=0
    #allocation2 [shape = 'u8[8192]{0}', space=vmem, size = 0x2000, scoped, tag = 'input window, operand 0, single buffered']
    #allocation3 [shape = 's32[1]{0}', space=sflag, size = 0x4, scoped, tag = 'scoped memory for tpu_custom_call.1']
    #allocation4 [shape = 's32[1]{0}', space=sflag, size = 0x4, scoped, tag = 'scoped memory for tpu_custom_call.1']
    #allocation5 [shape = 'u8[16384]{0}', space=vmem, size = 0x4000, scoped, tag = 'input window, operand 1, single buffered']
    #allocation6 [shape = 's32[1]{0}', space=sflag, size = 0x4, scoped, tag = 'scoped memory for tpu_custom_call.1']
    #allocation7 [shape = 'u8[32768]{0}', space=vmem, size = 0x8000, scoped, tag = 'output window, operand 0, single buffered']
    %7 = vsyncpa [#allocation3], 0
    %8 = vsyncpa [#allocation6], 0
    %9 = vsyncpa [#allocation4], 0
    // Predicated region
    $region2: #{tpu_custom_call.1} parent=1 // pred_check
      _
    $region3: #{tpu_custom_call.1} parent=1 // pred_check_branch
      %11 = sbr.rel (0) target = $region5
    $region4: #{tpu_custom_call.1} parent=1 // pred_region
      %s13 = ssub.s32 256, 256
      %14 = vsyncadd [#allocation3], %s13
      %s15 = sshll.u32 [#allocation2], 4
      %s16 = int_to_ptr.vmem [resolvable:$true] %s15
      %21 = dma.hbm_to_vmem [thread:$0]  %s0, 256, %s16, [#allocation3], 64, 64, 4
    $region5: #{tpu_custom_call.1} parent=1 // pred_fallthru
      _
    // Predicated region
    $region6: #{tpu_custom_call.1} parent=1 // pred_check
      _
    $region7: #{tpu_custom_call.1} parent=1 // pred_check_branch
      %23 = sbr.rel (0) target = $region9
    $region8: #{tpu_custom_call.1} parent=1 // pred_region
      %s25 = ssub.s32 512, 512
      %26 = vsyncadd [#allocation6], %s25
      %s27 = sshll.u32 [#allocation5], 4
      %s28 = int_to_ptr.vmem [resolvable:$true] %s27
      %33 = dma.hbm_to_vmem [thread:$0]  %s1, 512, %s28, [#allocation6], 128, 128, 8
    $region9: #{tpu_custom_call.1} parent=1 // pred_fallthru
      _
    // Predicated region
    $region10: #{tpu_custom_call.1} parent=1 // pred_check
      _
    $region11: #{tpu_custom_call.1} parent=1 // pred_check_branch
      %35 = sbr.rel (0) target = $region13
    $region12: #{tpu_custom_call.1} parent=1 // pred_region
      %36 = dma.done [#allocation3], 256
    $region13: #{tpu_custom_call.1} parent=1 // pred_fallthru
      _
    // Predicated region
    $region14: #{tpu_custom_call.1} parent=1 // pred_check
      _
    $region15: #{tpu_custom_call.1} parent=1 // pred_check_branch
      %38 = sbr.rel (0) target = $region17
    $region16: #{tpu_custom_call.1} parent=1 // pred_region
      %39 = dma.done [#allocation6], 512
    $region17: #{tpu_custom_call.1} parent=1 // pred_fallthru
      _
    %v41 = vld [vmem:[#allocation2] sm:$0xf]
    %v42 = vld [vmem:[#allocation2 + $0x4] sm:$0xf]
    %v43 = vld [vmem:[#allocation2 + $0x8] sm:$0xf]
    %v44 = vld [vmem:[#allocation2 + $0xc] sm:$0xf]
    %v45 = vld [vmem:[#allocation5] sm:$0xff]
    %v46 = vld [vmem:[#allocation5 + $0x8] sm:$0xff]
    %v47 = vld [vmem:[#allocation5 + $0x10] sm:$0xff]
    %v48 = vld [vmem:[#allocation5 + $0x18] sm:$0xff]
    %v53 = vunpack.c.l.b16 %v41
    %v54 = vunpack.c.l.b16 %v42
    %v55 = vunpack.c.l.b16 %v43
    %v56 = vunpack.c.l.b16 %v44
    %v57 = vpack.c.b16 %v54, %v53
    %v58 = vpack.c.b16 %v56, %v55
    %v63 = vunpack.c.l.b16 %v45
    %v64 = vunpack.c.h.b16 %v45
    %v65 = vunpack.c.l.b16 %v46
    %v66 = vunpack.c.h.b16 %v46
    %v67 = vunpack.c.l.b16 %v47
    %v68 = vunpack.c.h.b16 %v47
    %v69 = vunpack.c.l.b16 %v48
    %v70 = vunpack.c.h.b16 %v48
    %v71 = vpack.c.b16 %v65, %v63
    %v72 = vpack.c.b16 %v66, %v64
    %v73 = vpack.c.b16 %v69, %v67
    %v74 = vpack.c.b16 %v70, %v68
    %vm79 = vcmask 261120
    %v81 = vsel %vm79, %v57, 0
    %v84 = vsel %vm79, %v58, 0
    %86 = vmatprep.subr.bf16.mxu0 %v72
    %87 = vmatpush1.bf16.msra.mxu0 %v71
    %88 = vmatprep.subr.bf16.mxu0 %v74
    %89 = vmatpush1.bf16.msra.mxu0 %v73
    %90 = vmatprep.subr.bf16.mxu0 0
    %91 = vmatpush1.bf16.msra.mxu0 0
    %92 = vmatprep.subr.bf16.mxu0 0
    %93 = vmatpush1.bf16.msra.mxu0 0
    %94 = vmatprep.subr.bf16.mxu0 0
    %95 = vmatpush1.bf16.msra.mxu0 0
    %96 = vmatprep.subr.bf16.mxu0 0
    %97 = vmatpush1.bf16.msra.mxu0 0
    %98 = vmatprep.subr.bf16.mxu0 0
    %99 = vmatpush1.bf16.msra.mxu0 0
    %100 = vmatprep.subr.bf16.mxu0 0
    %101 = vmatpush1.bf16.msra.mxu0 0
    %102 = vmatprep.subr.bf16.mxu0 0
    %103 = vmatpush1.bf16.msra.mxu0 0
    %104 = vmatprep.subr.bf16.mxu0 0
    %105 = vmatpush1.bf16.msra.mxu0 0
    %106 = vmatprep.subr.bf16.mxu0 0
    %107 = vmatpush1.bf16.msra.mxu0 0
    %108 = vmatprep.subr.bf16.mxu0 0
    %109 = vmatpush1.bf16.msra.mxu0 0
    %110 = vmatprep.subr.bf16.mxu0 0
    %111 = vmatpush1.bf16.msra.mxu0 0
    %112 = vmatprep.subr.bf16.mxu0 0
    %113 = vmatpush1.bf16.msra.mxu0 0
    %114 = vmatprep.subr.bf16.mxu0 0
    %115 = vmatpush1.bf16.msra.mxu0 0
    %116 = vmatprep.subr.bf16.mxu0 0
    %117 = vmatpush1.bf16.msra.mxu0 0
    %118 = vmatprep.mubr.bf16.mxu0 0
    %119 = vmatmul.mubr.bf16.gmra.mrb[0].mxu0 %v81
    %v120 = vpop.f32.mrb[0].mxu0
    %v121 = vadd.f32 0.0, %v120
    %v122 = vpop.f32.mrb[0].mxu0
    %v123 = vadd.f32 0.0, %v122
    %v124 = vpop.f32.mrb[0].mxu0
    %v125 = vadd.f32 0.0, %v124
    %v126 = vpop.f32.mrb[0].mxu0
    %v127 = vadd.f32 0.0, %v126
    %128 = vmatprep.mubr.bf16.mxu0 0
    %129 = vmatmul.mubr.bf16.gmra.mrb[0].mxu0 %v84
    %v130 = vpop.f32.mrb[0].mxu0
    %v131 = vadd.f32 0.0, %v130
    %v132 = vpop.f32.mrb[0].mxu0
    %v133 = vadd.f32 0.0, %v132
    %v134 = vpop.f32.mrb[0].mxu0
    %v135 = vadd.f32 0.0, %v134
    %v136 = vpop.f32.mrb[0].mxu0
    %v137 = vadd.f32 0.0, %v136
    %138 = vdwg.mxu0
    %139 = vst [vmem:[#allocation7] sm:$0xff] %v121
    %vm140 = vcmask 64512
    %141 = vst.msk [vmem:[#allocation7 + $0x8] sm:$0xff] %vm140, %v123
    %142 = vst [vmem:[#allocation7 + $0x10] sm:$0xff] %v125
    %143 = vst.msk [vmem:[#allocation7 + $0x18] sm:$0xff] %vm140, %v127
    %144 = vst [vmem:[#allocation7 + $0x20] sm:$0xff] %v131
    %145 = vst.msk [vmem:[#allocation7 + $0x28] sm:$0xff] %vm140, %v133
    %146 = vst [vmem:[#allocation7 + $0x30] sm:$0xff] %v135
    %147 = vst.msk [vmem:[#allocation7 + $0x38] sm:$0xff] %vm140, %v137
    // Predicated region
    $region18: #{tpu_custom_call.1} parent=1 // pred_check
      _
    $region19: #{tpu_custom_call.1} parent=1 // pred_check_branch
      %149 = sbr.rel (0) target = $region21
    $region20: #{tpu_custom_call.1} parent=1 // pred_region
      %s151 = ssub.s32 1024, 1024
      %152 = vsyncadd [#allocation4], %s151
      %s153 = sshll.u32 [#allocation7], 4
      %s154 = int_to_ptr.vmem [resolvable:$true] %s153
      %159 = dma.vmem_to_hbm [thread:$0]  %s154, 1024, %s2, [#allocation4], 256, 256, 16
    $region21: #{tpu_custom_call.1} parent=1 // pred_fallthru
      _
    // Predicated region
    $region22: #{tpu_custom_call.1} parent=1 // pred_check
      _
    $region23: #{tpu_custom_call.1} parent=1 // pred_check_branch
      %161 = sbr.rel (0) target = $region25
    $region24: #{tpu_custom_call.1} parent=1 // pred_region
      %162 = dma.done [#allocation4], 1024
    $region25: #{tpu_custom_call.1} parent=1 // pred_fallthru
      _
    %163 = vsyncpa [#allocation3], 1
    %164 = vsyncpa [#allocation6], 1
    %165 = vsyncpa [#allocation4], 1

</llo_original>
